<compile_context>
chip_gen: v6e
topology: v6e:2x2x1
jax: 0.10.0
libtpu: 0.0.40
codegen_flags: <defaults>
</compile_context>

<pallas_src>
import functools

import jax
import jax.numpy as jnp
from jax import lax
from jax.experimental import pallas as pl
from jax.experimental.pallas import tpu as pltpu

_F32 = jnp.float32


def _round_up(v, m):
    return (v + m - 1) // m * m


def _vmem_limit_bytes():
    """Generation-aware scoped-VMEM limit (~75% of physical VMEM)."""
    cap = 64 * 1024 * 1024  # conservative default = v7x physical
    try:
        info = pltpu.get_tpu_info()
        cap_attr = getattr(info, "vmem_capacity_bytes", None)
        if cap_attr:
            cap = int(cap_attr)
    except Exception:
        pass
    return int(cap) * 3 // 4


# ----------------------------------------------------------------------------
# Kernel 1: fused single-block path (whole (M, Cp) array resident in VMEM).
# Two-pass mean/var (better numerics), one HBM read + one write.
# ----------------------------------------------------------------------------
def _bn1d_fused_kernel(m_total, x_ref, gamma_ref, beta_ref,
                       o_ref, mean_ref, std_ref):
    x = x_ref[...].astype(_F32)                               # (M, Cp)
    m = jnp.float32(m_total)
    mean = jnp.sum(x, axis=0, keepdims=True) / m              # (1, Cp)
    d = x - mean
    var = jnp.sum(d * d, axis=0, keepdims=True) / (m - 1.0)   # unbiased (ddof=1)
    std = jnp.sqrt(var)                                       # no eps (module semantics)
    scale = gamma_ref[...].astype(_F32) / std
    shift = beta_ref[...].astype(_F32) - mean * scale
    mean_ref[...] = mean
    std_ref[...] = std
    o_ref[...] = (x * scale + shift).astype(o_ref.dtype)


# ----------------------------------------------------------------------------
# Kernel 2: streaming stats over M-tiles (reduction grid, "arbitrary").
# ----------------------------------------------------------------------------
def _bn1d_stats_kernel(m_total, mask_tail, x_ref, gamma_ref, beta_ref,
                       mean_ref, std_ref, scale_ref, shift_ref,
                       sum_ref, sumsq_ref):
    j = pl.program_id(0)
    rows, cols = x_ref.shape

    @pl.when(j == 0)
    def _init():
        sum_ref[...] = jnp.zeros_like(sum_ref)
        sumsq_ref[...] = jnp.zeros_like(sumsq_ref)

    x = x_ref[...].astype(_F32)
    if mask_tail:  # static python bool: only traced when M % rows != 0
        row_id = lax.broadcasted_iota(jnp.int32, (rows, cols), 0)
        limit = m_total - j * rows
        x = jnp.where(row_id < limit, x, 0.0)

    if rows % 8 == 0:
        # VPU-only partial reduction into an (8, Cp) accumulator; the single
        # 8 -> 1 cross-sublane (XLU) reduce is deferred to the finalize step.
        sum_ref[...] += x.reshape(rows // 8, 8, cols).sum(axis=0)
        sumsq_ref[...] += (x * x).reshape(rows // 8, 8, cols).sum(axis=0)
    else:
        # Rare: a single odd-sized block (block == full array).
        sum_ref[0:1, :] += jnp.sum(x, axis=0, keepdims=True)
        sumsq_ref[0:1, :] += jnp.sum(x * x, axis=0, keepdims=True)

    @pl.when(j == pl.num_programs(0) - 1)
    def _finalize():
        m = jnp.float32(m_total)
        s = jnp.sum(sum_ref[...], axis=0, keepdims=True)       # (1, Cp)
        sq = jnp.sum(sumsq_ref[...], axis=0, keepdims=True)    # (1, Cp)
        mean = s / m
        var = (sq - m * mean * mean) / (m - 1.0)                # unbiased
        var = jnp.maximum(var, 0.0)
        std = jnp.sqrt(var)                                     # no eps
        scale = gamma_ref[...].astype(_F32) / std
        mean_ref[...] = mean
        std_ref[...] = std
        scale_ref[...] = scale
        shift_ref[...] = beta_ref[...].astype(_F32) - mean * scale


# ----------------------------------------------------------------------------
# Kernel 3: streaming normalize (one FMA per element, lane-dense store).
# ----------------------------------------------------------------------------
def _bn1d_norm_kernel(x_ref, scale_ref, shift_ref, o_ref):
    x = x_ref[...].astype(_F32)
    o_ref[...] = (x * scale_ref[...] + shift_ref[...]).astype(o_ref.dtype)


# ----------------------------------------------------------------------------
# Wrapper
# ----------------------------------------------------------------------------
def _pick_rows(m, c_p, itemsize, target_bytes):
    """Largest multiple-of-8 row tile whose block is ~target_bytes, or M itself."""
    rows = (target_bytes // max(1, c_p * itemsize)) // 8 * 8
    rows = max(8, rows)
    if rows >= m:
        return m
    return rows


def batchnorm1d_forward(x, gamma=None, beta=None,
                        running_mean=None, running_std=None,
                        momentum=0.9, training=True,
                        track_running_stats=True, affine=True,
                        m_tile=None, force_tiled=False):
    """Mirrors BatchNorm1d.forward.

    x: (N, C) or (N, C, *spatial).  Returns (out of shape (M, C) with
    M = N * prod(spatial), new_running_mean, new_running_std); running buffers
    keep the module's (C, 1) shape.
    """
    C = x.shape[1]
    if x.ndim == 2:
        x_mc = x                                   # already (M, C): zero glue
    else:
        x_mc = jnp.moveaxis(x, 1, -1).reshape(-1, C)
    M = x_mc.shape[0]

    gamma_row = (jnp.asarray(gamma, _F32).reshape(1, C)
                 if (affine and gamma is not None) else jnp.ones((1, C), _F32))
    beta_row = (jnp.asarray(beta, _F32).reshape(1, C)
                if (affine and beta is not None) else jnp.zeros((1, C), _F32))

    # Lane-dense channel axis: pad C to a multiple of 128 so every store is an
    # unmasked vst.  Padded channels are sliced off before returning.
    Cp = _round_up(C, 128)
    pad = Cp - C
    if pad:
        x_mc = jnp.pad(x_mc, ((0, 0), (0, pad)))
        gamma_row = jnp.pad(gamma_row, ((0, 0), (0, pad)), constant_values=1.0)
        beta_row = jnp.pad(beta_row, ((0, 0), (0, pad)))

    itemsize = jnp.dtype(x.dtype).itemsize
    vmem_limit = _vmem_limit_bytes()
    target_block = max(1 << 20, vmem_limit // 6)   # ~8 MiB v7x, ~16 MiB v5e/v6e

    use_batch_stats = training or (not track_running_stats)
    new_rm, new_rs = running_mean, running_std
    mean_row = std_row = None

    fast_ok = (not force_tiled) and (M * Cp * 4 <= vmem_limit // 8)
    cparams_plain = pltpu.CompilerParams(vmem_limit_bytes=vmem_limit)

    if use_batch_stats and fast_ok:
        # Single fused kernel: x read once from HBM, out written once.
        out_p, mean_row, std_row = pl.pallas_call(
            functools.partial(_bn1d_fused_kernel, M),
            out_shape=(jax.ShapeDtypeStruct((M, Cp), x.dtype),
                       jax.ShapeDtypeStruct((1, Cp), _F32),
                       jax.ShapeDtypeStruct((1, Cp), _F32)),
            compiler_params=cparams_plain,
        )(x_mc, gamma_row, beta_row)
    else:
        # Streaming two-kernel path.
        if m_tile is not None:
            mt = M if int(m_tile) >= M else max(8, (int(m_tile) // 8) * 8)
        else:
            mt = _pick_rows(M, Cp, itemsize, target_block)
        n_steps = pl.cdiv(M, mt)
        mask_tail = (M % mt) != 0

        if use_batch_stats:
            mean_row, std_row, scale_row, shift_row = pl.pallas_call(
                functools.partial(_bn1d_stats_kernel, M, mask_tail),
                grid=(n_steps,),
                in_specs=[
                    pl.BlockSpec((mt, Cp), lambda j: (j, 0)),
                    pl.BlockSpec((1, Cp), lambda j: (0, 0)),
                    pl.BlockSpec((1, Cp), lambda j: (0, 0)),
                ],
                out_specs=(
                    pl.BlockSpec((1, Cp), lambda j: (0, 0)),
                    pl.BlockSpec((1, Cp), lambda j: (0, 0)),
                    pl.BlockSpec((1, Cp), lambda j: (0, 0)),
                    pl.BlockSpec((1, Cp), lambda j: (0, 0)),
                ),
                out_shape=(
                    jax.ShapeDtypeStruct((1, Cp), _F32),   # mean
                    jax.ShapeDtypeStruct((1, Cp), _F32),   # std (unbiased)
                    jax.ShapeDtypeStruct((1, Cp), _F32),   # scale = gamma / std
                    jax.ShapeDtypeStruct((1, Cp), _F32),   # shift = beta - mean*scale
                ),
                scratch_shapes=[pltpu.VMEM((8, Cp), _F32),
                                pltpu.VMEM((8, Cp), _F32)],
                compiler_params=pltpu.CompilerParams(
                    dimension_semantics=("arbitrary",),
                    vmem_limit_bytes=vmem_limit),
            )(x_mc, gamma_row, beta_row)
        else:
            # Eval with running stats: per-channel glue only (C elements).
            rm_row = jnp.asarray(running_mean, _F32).reshape(1, C)
            rs_row = jnp.asarray(running_std, _F32).reshape(1, C)
            if pad:
                rm_row = jnp.pad(rm_row, ((0, 0), (0, pad)))
                rs_row = jnp.pad(rs_row, ((0, 0), (0, pad)), constant_values=1.0)
            scale_row = gamma_row / rs_row
            shift_row = beta_row - rm_row * scale_row

        out_p = pl.pallas_call(
            _bn1d_norm_kernel,
            grid=(n_steps,),
            in_specs=[
                pl.BlockSpec((mt, Cp), lambda j: (j, 0)),
                pl.BlockSpec((1, Cp), lambda j: (0, 0)),
                pl.BlockSpec((1, Cp), lambda j: (0, 0)),
            ],
            out_specs=pl.BlockSpec((mt, Cp), lambda j: (j, 0)),
            out_shape=jax.ShapeDtypeStruct((M, Cp), x.dtype),
            compiler_params=pltpu.CompilerParams(
                dimension_semantics=("parallel",),
                vmem_limit_bytes=vmem_limit),
        )(x_mc, scale_row, shift_row)

    if (use_batch_stats and training and track_running_stats
            and running_mean is not None and running_std is not None):
        # Tiny (C,) EMA glue; folding it into the kernel finalize is negligible.
        b_mean = mean_row[0, :C].reshape(C, 1)
        b_std = std_row[0, :C].reshape(C, 1)
        new_rm = momentum * jnp.asarray(running_mean, _F32) + (1.0 - momentum) * b_mean
        new_rs = momentum * jnp.asarray(running_std, _F32) + (1.0 - momentum) * b_std

    out = out_p[:, :C] if pad else out_p
    return out, new_rm, new_rs


# ----------------------------------------------------------------------------
# Pure-JAX reference (module semantics) + demo / self-check
# ----------------------------------------------------------------------------
def _reference_forward(x, gamma, beta, running_mean, running_std,
                       momentum, training, track_running_stats):
    C = x.shape[1]
    x_mc = x if x.ndim == 2 else jnp.moveaxis(x, 1, -1).reshape(-1, C)
    x_mc = x_mc.astype(jnp.float32)
    mean = jnp.mean(x_mc, axis=0)
    std = jnp.std(x_mc, axis=0, ddof=1)
    new_rm, new_rs = running_mean, running_std
    if training and track_running_stats:
        new_rm = momentum * running_mean + (1.0 - momentum) * mean.reshape(-1, 1)
        new_rs = momentum * running_std + (1.0 - momentum) * std.reshape(-1, 1)
    if (not training) and track_running_stats:
        mean = running_mean[:, 0]
        std = running_std[:, 0]
    out = (x_mc - mean) / std * gamma[:, 0] + beta[:, 0]
    return out, new_rm, new_rs


if __name__ == "__main__":
    key = jax.random.PRNGKey(0)
    k1, k2, k3, k4, k5 = jax.random.split(key, 5)

    # ---- Case 1: 2-D (batch, features) training step -> fused fast path ----
    N, C = 64, 32
    x = jax.random.normal(k1, (N, C), dtype=jnp.float32)
    gamma = 1.0 + 0.1 * jax.random.normal(k2, (C, 1), dtype=jnp.float32)
    beta = 0.1 * jax.random.normal(k3, (C, 1), dtype=jnp.float32)
    rm = jnp.zeros((C, 1), jnp.float32)
    rs = jnp.ones((C, 1), jnp.float32)

    out, nrm, nrs = batchnorm1d_forward(x, gamma, beta, rm, rs,
                                        momentum=0.9, training=True,
                                        track_running_stats=True)
    jax.block_until_ready((out, nrm, nrs))
    ref_out, ref_rm, ref_rs = _reference_forward(x, gamma, beta, rm, rs, 0.9, True, True)
    assert out.shape == (N, C)
    assert jnp.allclose(out, ref_out, atol=2e-4, rtol=2e-4)
    assert jnp.allclose(nrm, ref_rm, atol=1e-5, rtol=1e-5)
    assert jnp.allclose(nrs, ref_rs, atol=1e-5, rtol=1e-5)

    # ---- Case 2: eval step using the running stats just produced ----
    out_e, _, _ = batchnorm1d_forward(x, gamma, beta, nrm, nrs,
                                      momentum=0.9, training=False,
                                      track_running_stats=True)
    jax.block_until_ready(out_e)
    ref_e, _, _ = _reference_forward(x, gamma, beta, nrm, nrs, 0.9, False, True)
    assert jnp.allclose(out_e, ref_e, atol=2e-4, rtol=2e-4)

    # ---- Case 3: 3-D (N, C, L) input -> channel-last reshape + lane padding ----
    N3, C3, L3 = 2, 4, 16
    x3 = jax.random.normal(k4, (N3, C3, L3), dtype=jnp.float32)
    g3 = jnp.ones((C3, 1), jnp.float32)
    b3 = jnp.zeros((C3, 1), jnp.float32)
    rm3 = jnp.zeros((C3, 1), jnp.float32)
    rs3 = jnp.ones((C3, 1), jnp.float32)
    out3, _, _ = batchnorm1d_forward(x3, g3, b3, rm3, rs3,
                                     momentum=0.9, training=True,
                                     track_running_stats=True)
    jax.block_until_ready(out3)
    ref3, _, _ = _reference_forward(x3, g3, b3, rm3, rs3, 0.9, True, True)
    assert out3.shape == (N3 * L3, C3)
    assert jnp.allclose(out3, ref3, atol=2e-4, rtol=2e-4)

    # ---- Case 4: forced streaming path with a masked tail block ----
    M4 = 40
    x4 = jax.random.normal(k5, (M4, C), dtype=jnp.float32)
    out4, nrm4, nrs4 = batchnorm1d_forward(x4, gamma, beta, rm, rs,
                                           momentum=0.9, training=True,
                                           track_running_stats=True,
                                           m_tile=16, force_tiled=True)
    jax.block_until_ready((out4, nrm4, nrs4))
    ref4, ref_rm4, ref_rs4 = _reference_forward(x4, gamma, beta, rm, rs, 0.9, True, True)
    assert jnp.allclose(out4, ref4, atol=2e-4, rtol=2e-4)
    assert jnp.allclose(nrm4, ref_rm4, atol=1e-4, rtol=1e-4)
    assert jnp.allclose(nrs4, ref_rs4, atol=1e-4, rtol=1e-4)

    print("KERNEL_OK")
</pallas_src>

<mosaic_0001>
module attributes {stable_mosaic.version = 11 : i64} {
  func.func @_bn1d_fused_kernel(%arg0: memref<64x128xf32, #tpu.memory_space<vmem>>, %arg1: memref<1x128xf32, #tpu.memory_space<vmem>>, %arg2: memref<1x128xf32, #tpu.memory_space<vmem>>, %arg3: memref<64x128xf32, #tpu.memory_space<vmem>>, %arg4: memref<1x128xf32, #tpu.memory_space<vmem>>, %arg5: memref<1x128xf32, #tpu.memory_space<vmem>>) attributes {dimension_semantics = [], scalar_prefetch = 0 : i64, scratch_operands = 0 : i64, tpu.core_type = #tpu.core_type<tc>} {
    %c0 = arith.constant 0 : index
    %c0_0 = arith.constant 0 : index
    %0 = vector.load %arg0[%c0, %c0_0] : memref<64x128xf32, #tpu.memory_space<vmem>>, vector<64x128xf32>
    %cst = arith.constant dense<0.000000e+00> : vector<128xf32>
    %1 = vector.multi_reduction <add>, %0, %cst [0] : vector<64x128xf32> to vector<128xf32>
    %2 = vector.shape_cast %1 : vector<128xf32> to vector<1x128xf32>
    %cst_1 = arith.constant 6.400000e+01 : f32
    %3 = vector.broadcast %cst_1 : f32 to vector<1x128xf32>
    %4 = arith.divf %2, %3 : vector<1x128xf32>
    %5 = vector.broadcast %4 : vector<1x128xf32> to vector<64x128xf32>
    %6 = arith.subf %0, %5 : vector<64x128xf32>
    %7 = arith.mulf %6, %6 : vector<64x128xf32>
    %cst_2 = arith.constant dense<0.000000e+00> : vector<128xf32>
    %8 = vector.multi_reduction <add>, %7, %cst_2 [0] : vector<64x128xf32> to vector<128xf32>
    %9 = vector.shape_cast %8 : vector<128xf32> to vector<1x128xf32>
    %cst_3 = arith.constant 6.400000e+01 : f32
    %cst_4 = arith.constant 1.000000e+00 : f32
    %10 = arith.subf %cst_3, %cst_4 : f32
    %11 = vector.broadcast %10 : f32 to vector<1x128xf32>
    %12 = arith.divf %9, %11 : vector<1x128xf32>
    %13 = math.sqrt %12 : vector<1x128xf32>
    %c0_5 = arith.constant 0 : index
    %c0_6 = arith.constant 0 : index
    %14 = vector.load %arg1[%c0_5, %c0_6] : memref<1x128xf32, #tpu.memory_space<vmem>>, vector<1x128xf32>
    %15 = arith.divf %14, %13 : vector<1x128xf32>
    %c0_7 = arith.constant 0 : index
    %c0_8 = arith.constant 0 : index
    %16 = vector.load %arg2[%c0_7, %c0_8] : memref<1x128xf32, #tpu.memory_space<vmem>>, vector<1x128xf32>
    %17 = arith.mulf %4, %15 : vector<1x128xf32>
    %18 = arith.subf %16, %17 : vector<1x128xf32>
    %c0_9 = arith.constant 0 : index
    %c0_10 = arith.constant 0 : index
    %19 = vector.load %arg4[%c0_9, %c0_10] : memref<1x128xf32, #tpu.memory_space<vmem>>, vector<1x128xf32>
    tpu.vector_store %arg4[%c0_9, %c0_10], %4 {strides = array<i32>} : memref<1x128xf32, #tpu.memory_space<vmem>>, vector<1x128xf32>,
    %c0_11 = arith.constant 0 : index
    %c0_12 = arith.constant 0 : index
    %20 = vector.load %arg5[%c0_11, %c0_12] : memref<1x128xf32, #tpu.memory_space<vmem>>, vector<1x128xf32>
    tpu.vector_store %arg5[%c0_11, %c0_12], %13 {strides = array<i32>} : memref<1x128xf32, #tpu.memory_space<vmem>>, vector<1x128xf32>,
    %21 = vector.broadcast %15 : vector<1x128xf32> to vector<64x128xf32>
    %22 = arith.mulf %0, %21 : vector<64x128xf32>
    %23 = vector.broadcast %18 : vector<1x128xf32> to vector<64x128xf32>
    %24 = arith.addf %22, %23 : vector<64x128xf32>
    %c0_13 = arith.constant 0 : index
    %c0_14 = arith.constant 0 : index
    %25 = vector.load %arg3[%c0_13, %c0_14] : memref<64x128xf32, #tpu.memory_space<vmem>>, vector<64x128xf32>
    tpu.vector_store %arg3[%c0_13, %c0_14], %24 {strides = array<i32>} : memref<64x128xf32, #tpu.memory_space<vmem>>, vector<64x128xf32>,
    return
  }
}

</mosaic_0001>

<llo_original>
// kernel: tpu_custom_call.1
$region0: #{tpu_custom_call.1}
  #allocation0 [shape = 'u32[]', space=smem, size = 0x4, offset = 0x4, fixed_abs, tag = 'smem constant byte address 0x4 - core index']
  #allocation1 [shape = 'u32[144,128]{1,0:T(1,128)}', space=vmem, size = 0x12000, scoped, tag = 'internal scratch']
  %s0 = inlined_call_operand.hbm [shape: f32[64,128], index: 0, kind: input, shape index: {}]
  %s1 = inlined_call_operand.vmem [shape: f32[1,128], index: 1, kind: input, shape index: {}]
  %s2 = inlined_call_operand.vmem [shape: f32[1,128], index: 2, kind: input, shape index: {}]
  %s3 = inlined_call_operand.hbm [shape: f32[64,128], index: 3, kind: output, shape index: {0}]
  %s4 = inlined_call_operand.hbm [shape: f32[1,128], index: 4, kind: output, shape index: {1}]
  %s5 = inlined_call_operand.hbm [shape: f32[1,128], index: 5, kind: output, shape index: {2}]
  %6 = xla_tuple %s3, %s4, %s5
  %s7 = sld [smem:[#allocation0]]
  $region42: #{tpu_custom_call.1} parent=0
    _
  %s9 = ssub.s32 1, %s7
  %s10 = scalar_select 0, %s9, %s7
  $region1: #{tpu_custom_call.1} parent=0
    #allocation2 [shape = 'u8[32768]{0}', space=vmem, size = 0x8000, scoped, tag = 'input window, operand 0, single buffered']
    #allocation3 [shape = 's32[1]{0}', space=sflag, size = 0x4, scoped, tag = 'scoped memory for tpu_custom_call.1']
    #allocation4 [shape = 's32[1]{0}', space=sflag, size = 0x4, scoped, tag = 'scoped memory for tpu_custom_call.1']
    #allocation5 [shape = 'u8[32768]{0}', space=vmem, size = 0x8000, scoped, tag = 'output window, operand 0, single buffered']
    #allocation6 [shape = 'u8[512]{0}', space=vmem, size = 0x400, scoped, tag = 'output window, operand 1, single buffered']
    #allocation7 [shape = 's32[1]{0}', space=sflag, size = 0x4, scoped, tag = 'scoped memory for tpu_custom_call.1']
    #allocation8 [shape = 'u8[512]{0}', space=vmem, size = 0x400, scoped, tag = 'output window, operand 2, single buffered']
    %11 = vsyncpa [#allocation3], 0
    %12 = vsyncpa [#allocation4], 0
    %13 = vsyncpa [#allocation7], 0
    // Predicated region
    $region2: #{tpu_custom_call.1} parent=1 // pred_check
      _
    $region3: #{tpu_custom_call.1} parent=1 // pred_check_branch
      %15 = sbr.rel (0) target = $region5
    $region4: #{tpu_custom_call.1} parent=1 // pred_region
      %s17 = ssub.s32 1024, 1024
      %18 = vsyncadd [#allocation3], %s17
      %s19 = sshll.u32 [#allocation2], 4
      %s20 = int_to_ptr.vmem [resolvable:$true] %s19
      %25 = dma.hbm_to_vmem [thread:$0]  %s0, 1024, %s20, [#allocation3], 128, 128, 8
    $region5: #{tpu_custom_call.1} parent=1 // pred_fallthru
      _
    // Predicated region
    $region6: #{tpu_custom_call.1} parent=1 // pred_check
      _
    $region7: #{tpu_custom_call.1} parent=1 // pred_check_branch
      %27 = sbr.rel (0) target = $region9
    $region8: #{tpu_custom_call.1} parent=1 // pred_region
      _
    $region9: #{tpu_custom_call.1} parent=1 // pred_fallthru
      _
    // Predicated region
    $region10: #{tpu_custom_call.1} parent=1 // pred_check
      _
    $region11: #{tpu_custom_call.1} parent=1 // pred_check_branch
      %29 = sbr.rel (0) target = $region13
    $region12: #{tpu_custom_call.1} parent=1 // pred_region
      _
    $region13: #{tpu_custom_call.1} parent=1 // pred_fallthru
      _
    // Predicated region
    $region14: #{tpu_custom_call.1} parent=1 // pred_check
      _
    $region15: #{tpu_custom_call.1} parent=1 // pred_check_branch
      %31 = sbr.rel (0) target = $region17
    $region16: #{tpu_custom_call.1} parent=1 // pred_region
      %32 = dma.done [#allocation3], 1024
    $region17: #{tpu_custom_call.1} parent=1 // pred_fallthru
      _
    %v33 = vld [vmem:[#allocation2] sm:$0xff]
    %v34 = vld [vmem:[#allocation2 + $0x8] sm:$0xff]
    %v35 = vld [vmem:[#allocation2 + $0x10] sm:$0xff]
    %v36 = vld [vmem:[#allocation2 + $0x18] sm:$0xff]
    %v37 = vld [vmem:[#allocation2 + $0x20] sm:$0xff]
    %v38 = vld [vmem:[#allocation2 + $0x28] sm:$0xff]
    %v39 = vld [vmem:[#allocation2 + $0x30] sm:$0xff]
    %v40 = vld [vmem:[#allocation2 + $0x38] sm:$0xff]
    %v41 = vadd.f32 %v33, %v34
    %v42 = vadd.f32 %v41, %v35
    %v43 = vadd.f32 %v42, %v36
    %v44 = vadd.f32 %v43, %v37
    %v45 = vadd.f32 %v44, %v38
    %v46 = vadd.f32 %v45, %v39
    %v47 = vadd.f32 %v46, %v40
    %v48 = vrot.slane %v47, 4
    %v49 = vadd.f32 %v47, %v48
    %v50 = vrot.slane %v49, 2
    %v51 = vadd.f32 %v49, %v50
    %v52 = vrot.slane %v51, 1
    %v53 = vadd.f32 %v51, %v52
    %v54 = vrcp.pop 64.0
    %v55 = vmul.f32 %v53, %v54
    %v56 = vsub.f32 %v33, %v55
    %v57 = vsub.f32 %v34, %v55
    %v58 = vsub.f32 %v35, %v55
    %v59 = vsub.f32 %v36, %v55
    %v60 = vsub.f32 %v37, %v55
    %v61 = vsub.f32 %v38, %v55
    %v62 = vsub.f32 %v39, %v55
    %v63 = vsub.f32 %v40, %v55
    %v64 = vmul.f32 %v56, %v56
    %v65 = vmul.f32 %v57, %v57
    %v66 = vmul.f32 %v58, %v58
    %v67 = vmul.f32 %v59, %v59
    %v68 = vmul.f32 %v60, %v60
    %v69 = vmul.f32 %v61, %v61
    %v70 = vmul.f32 %v62, %v62
    %v71 = vmul.f32 %v63, %v63
    %v72 = vadd.f32 %v64, %v65
    %v73 = vadd.f32 %v72, %v66
    %v74 = vadd.f32 %v73, %v67
    %v75 = vadd.f32 %v74, %v68
    %v76 = vadd.f32 %v75, %v69
    %v77 = vadd.f32 %v76, %v70
    %v78 = vadd.f32 %v77, %v71
    %v79 = vrot.slane %v78, 4
    %v80 = vadd.f32 %v78, %v79
    %v81 = vrot.slane %v80, 2
    %v82 = vadd.f32 %v80, %v81
    %v83 = vrot.slane %v82, 1
    %v84 = vadd.f32 %v82, %v83
    %v85 = vrcp.pop 63.0
    %v86 = vmul.f32 %v84, %v85
    %v87 = vrsqrt.pop %v86
    %v88 = vmul.f32 %v86, %v87
    %vm89 = vcmp.eq.f32.partialorder %v86, inf
    %v90 = vsel %vm89, %v86, %v88
    %vm91 = vcmp.eq.f32.partialorder %v86, 0.0
    %v92 = vand.u32 %v86, 2147483648
    %v93 = vsel %vm91, %v92, %v90
    %v94 = vld [vmem:[%s1] sm:$0x1]
    %v95 = vrcp.pop %v93
    %v96 = vmul.f32 %v94, %v95
    %v97 = vld [vmem:[%s2] sm:$0x1]
    %v98 = vmul.f32 %v55, %v96
    %v99 = vsub.f32 %v97, %v98
    %100 = vst [vmem:[#allocation6] sm:$0x1] %v55
    %101 = vst [vmem:[#allocation8] sm:$0x1] %v93
    %v103 = vlaneseq
    %v104 = vshrl.u32 %v103, 7
    %v105 = vsub.s32 0, %v104
    %v106 = vrot.slane %v96, %v105
    %v108 = vmul.f32 %v33, %v106
    %v109 = vmul.f32 %v34, %v106
    %v110 = vmul.f32 %v35, %v106
    %v111 = vmul.f32 %v36, %v106
    %v112 = vmul.f32 %v37, %v106
    %v113 = vmul.f32 %v38, %v106
    %v114 = vmul.f32 %v39, %v106
    %v115 = vmul.f32 %v40, %v106
    %v117 = vlaneseq
    %v118 = vshrl.u32 %v117, 7
    %v119 = vsub.s32 0, %v118
    %v120 = vrot.slane %v99, %v119
    %v122 = vadd.f32 %v108, %v120
    %v123 = vadd.f32 %v109, %v120
    %v124 = vadd.f32 %v110, %v120
    %v125 = vadd.f32 %v111, %v120
    %v126 = vadd.f32 %v112, %v120
    %v127 = vadd.f32 %v113, %v120
    %v128 = vadd.f32 %v114, %v120
    %v129 = vadd.f32 %v115, %v120
    %130 = vst [vmem:[#allocation5] sm:$0xff] %v122
    %131 = vst [vmem:[#allocation5 + $0x8] sm:$0xff] %v123
    %132 = vst [vmem:[#allocation5 + $0x10] sm:$0xff] %v124
    %133 = vst [vmem:[#allocation5 + $0x18] sm:$0xff] %v125
    %134 = vst [vmem:[#allocation5 + $0x20] sm:$0xff] %v126
    %135 = vst [vmem:[#allocation5 + $0x28] sm:$0xff] %v127
    %136 = vst [vmem:[#allocation5 + $0x30] sm:$0xff] %v128
    %137 = vst [vmem:[#allocation5 + $0x38] sm:$0xff] %v129
    // Predicated region
    $region18: #{tpu_custom_call.1} parent=1 // pred_check
      _
    $region19: #{tpu_custom_call.1} parent=1 // pred_check_branch
      %139 = sbr.rel (0) target = $region21
    $region20: #{tpu_custom_call.1} parent=1 // pred_region
      %s141 = ssub.s32 1024, 1024
      %142 = vsyncadd [#allocation4], %s141
      %s143 = sshll.u32 [#allocation5], 4
      %s144 = int_to_ptr.vmem [resolvable:$true] %s143
      %149 = dma.vmem_to_hbm [thread:$0]  %s144, 1024, %s3, [#allocation4], 128, 128, 8
    $region21: #{tpu_custom_call.1} parent=1 // pred_fallthru
      _
    // Predicated region
    $region22: #{tpu_custom_call.1} parent=1 // pred_check
      _
    $region23: #{tpu_custom_call.1} parent=1 // pred_check_branch
      %151 = sbr.rel (0) target = $region25
    $region24: #{tpu_custom_call.1} parent=1 // pred_region
      %s153 = ssub.s32 16, 16
      %154 = vsyncadd [#allocation7], %s153
      %s156 = sshll.u32 [#allocation6], 4
      %s157 = int_to_ptr.vmem [resolvable:$true] %s156
      %159 = dma.vmem_to_hbm [thread:$0]  %s157, 16, %s4, [#allocation7]
    $region25: #{tpu_custom_call.1} parent=1 // pred_fallthru
      _
    // Predicated region
    $region26: #{tpu_custom_call.1} parent=1 // pred_check
      _
    $region27: #{tpu_custom_call.1} parent=1 // pred_check_branch
      %161 = sbr.rel (0) target = $region29
    $region28: #{tpu_custom_call.1} parent=1 // pred_region
      %s163 = ssub.s32 16, 16
      %164 = vsyncadd [#allocation7], %s163
      %s166 = sshll.u32 [#allocation8], 4
      %s167 = int_to_ptr.vmem [resolvable:$true] %s166
      %169 = dma.vmem_to_hbm [thread:$0]  %s167, 16, %s5, [#allocation7]
    $region29: #{tpu_custom_call.1} parent=1 // pred_fallthru
      _
    // Predicated region
    $region30: #{tpu_custom_call.1} parent=1 // pred_check
      _
    $region31: #{tpu_custom_call.1} parent=1 // pred_check_branch
      %171 = sbr.rel (0) target = $region33
    $region32: #{tpu_custom_call.1} parent=1 // pred_region
      %172 = dma.done [#allocation4], 1024
    $region33: #{tpu_custom_call.1} parent=1 // pred_fallthru
      _
    // Predicated region
    $region34: #{tpu_custom_call.1} parent=1 // pred_check
      _
    $region35: #{tpu_custom_call.1} parent=1 // pred_check_branch
      %174 = sbr.rel (0) target = $region37
    $region36: #{tpu_custom_call.1} parent=1 // pred_region
      %175 = dma.done [#allocation7], 16
    $region37: #{tpu_custom_call.1} parent=1 // pred_fallthru
      _
    // Predicated region
    $region38: #{tpu_custom_call.1} parent=1 // pred_check
      _
    $region39: #{tpu_custom_call.1} parent=1 // pred_check_branch
      %177 = sbr.rel (0) target = $region41
    $region40: #{tpu_custom_call.1} parent=1 // pred_region
      %178 = dma.done [#allocation7], 16
    $region41: #{tpu_custom_call.1} parent=1 // pred_fallthru
      _
    %179 = vsyncpa [#allocation3], 1
    %180 = vsyncpa [#allocation4], 1
    %181 = vsyncpa [#allocation7], 1

</llo_original>
